<compile_context>
chip_gen: v6e
topology: v6e:2x2x1
jax: 0.10.0
libtpu: 0.0.40
codegen_flags: <defaults>
</compile_context>

<pallas_src>
import math

import jax
import jax.numpy as jnp
from jax.experimental import pallas as pl
from jax.experimental.pallas import tpu as pltpu


# --------------------------------------------------------------------------
# Generation-aware sizing helpers
# --------------------------------------------------------------------------

def _tpu_generation():
    """Returns (num_tensorcores_per_chip, vmem_block_budget, vmem_limit_cap)."""
    kind = ""
    try:
        kind = jax.devices()[0].device_kind.lower()
    except Exception:  # pragma: no cover - defensive, heuristics only
        pass
    if "7" in kind:
        # v7x: 2 TensorCores / chip, only 64 MiB VMEM per TC.
        return 2, 24 * 1024 * 1024, 48 * 1024 * 1024
    # v5e / v6e (and older single-die parts): 1 TensorCore, 128 MiB VMEM.
    return 1, 80 * 1024 * 1024, 110 * 1024 * 1024


def _pick_lstms_per_block(num_lstms, bytes_per_lstm, budget, min_grid_steps):
    """Largest divisor nb of num_lstms whose per-step footprint fits `budget`
    while keeping at least `min_grid_steps` grid steps (so both v7x
    TensorCores get work; min_grid_steps == 1 on single-TC chips)."""
    best = None
    for nb in range(1, num_lstms + 1):
        if num_lstms % nb:
            continue
        if num_lstms // nb < min(min_grid_steps, num_lstms):
            continue
        if nb * bytes_per_lstm > budget:
            continue
        best = nb
    if best is None:
        # TODO(synk): add a K / 4H tiling fallback for very large hidden/inp.
        raise ValueError(
            "A single LSTM's block (%.1f MiB incl. double buffering and f32 "
            "intermediates) exceeds the VMEM budget (%.1f MiB)."
            % (bytes_per_lstm / 2.0**20, budget / 2.0**20))
    return best


def _pad_axis(a, axis, new_size):
    if a.shape[axis] == new_size:
        return a
    pad = [(0, 0)] * a.ndim
    pad[axis] = (0, new_size - a.shape[axis])
    return jnp.pad(a, pad)


# --------------------------------------------------------------------------
# Kernels
# --------------------------------------------------------------------------

def _lstm_gate_math(preact, c, hidden):
    """preact (..., 4H) f32, c (..., H) f32 -> (h_t, c_t) both f32."""
    if hidden % 128 != 0:
        # Lane-friendly path for small H: full-width transcendentals (the EUP
        # has slack on a mem-bound kernel) + lane-mask select instead of
        # slicing preact inside a vreg at the 3H boundary.
        lane = jax.lax.broadcasted_iota(jnp.int32, preact.shape,
                                        preact.ndim - 1)
        act = jnp.where(lane < 3 * hidden,
                        jax.nn.sigmoid(preact), jnp.tanh(preact))
    else:
        act = jnp.concatenate(
            [jax.nn.sigmoid(preact[..., :3 * hidden]),
             jnp.tanh(preact[..., 3 * hidden:])], axis=-1)

    i_t = act[..., :hidden]
    f_t = act[..., hidden:2 * hidden]
    o_t = act[..., 2 * hidden:3 * hidden]
    g_t = act[..., 3 * hidden:]

    # Gate / state math always in f32.
    c_t = c * f_t + i_t * g_t
    h_t = o_t * jnp.tanh(c_t)
    return h_t, c_t


def _group_lstm_kernel(xh_ref, c_ref, w_ref, hc_ref):
    """Single-timestep step over a block of Nb LSTMs.

    xh_ref : (Nb, B, inp+H)  concat of x and h, already in streaming dtype
    c_ref  : (Nb, B, H)
    w_ref  : (Nb, inp+H, 4H) concat of Wi and Wh along K, streaming dtype
    hc_ref : (Nb, B, 2H)     packed [h_t | c_t] output, f32
    """
    hidden = hc_ref.shape[-1] // 2

    w = w_ref[...]
    xh = xh_ref[...]                                  # same dtype as w
    c = c_ref[...].astype(jnp.float32)

    # One fused MXU matmul per LSTM, batched over the Nb LSTMs in the block.
    preact = jnp.einsum("nbk,nko->nbo", xh, w,
                        preferred_element_type=jnp.float32)

    h_t, c_t = _lstm_gate_math(preact, c, hidden)

    # Single lane-dense store of the packed [h | c] result (f32).
    hc_ref[...] = jnp.concatenate([h_t, c_t], axis=-1).astype(hc_ref.dtype)


def _group_lstm_seq_kernel(x_ref, h0_ref, c0_ref, w_ref, hc_ref, h_sc, c_sc):
    """Whole-sequence step: grid = (lstm_block, timestep).

    x_ref  : (1, Nb, B, inp)  x_t for this timestep, streaming dtype
    h0_ref : (Nb, B, H)       initial h (same block for every t -> resident)
    c0_ref : (Nb, B, H)       initial c (resident)
    w_ref  : (Nb, inp+H, 4H)  fused weights (resident across all timesteps)
    hc_ref : (1, Nb, B, 2H)   packed [h_t | c_t] output for this timestep, f32
    h_sc   : VMEM (Nb, B, H)  f32 carried hidden state
    c_sc   : VMEM (Nb, B, H)  f32 carried cell state
    """
    hidden = h_sc.shape[-1]
    t = pl.program_id(1)

    @pl.when(t == 0)
    def _():
        h_sc[...] = h0_ref[...].astype(jnp.float32)
        c_sc[...] = c0_ref[...].astype(jnp.float32)

    w = w_ref[...]
    xh = jnp.concatenate([x_ref[0], h_sc[...].astype(w.dtype)], axis=-1)
    preact = jnp.einsum("nbk,nko->nbo", xh, w,
                        preferred_element_type=jnp.float32)

    h_t, c_t = _lstm_gate_math(preact, c_sc[...], hidden)

    h_sc[...] = h_t
    c_sc[...] = c_t
    hc_ref[0] = jnp.concatenate([h_t, c_t], axis=-1).astype(hc_ref.dtype)


# --------------------------------------------------------------------------
# pallas_call wrappers (LSTM-major layout)
# --------------------------------------------------------------------------

def _group_lstm_pallas(xh_nm, c_nm, w_cat, *, lstms_per_block=None):
    """xh_nm (N,B,inp+H), c_nm (N,B,H), w_cat (N,inp+H,4H) -> (N,B,2H) f32."""
    num_lstms, batch, k = xh_nm.shape
    hidden = c_nm.shape[-1]

    num_tc, budget, vmem_cap = _tpu_generation()

    # Double-buffered streamed blocks + in-kernel f32 intermediates.
    stream_bytes = (batch * k * xh_nm.dtype.itemsize
                    + batch * hidden * c_nm.dtype.itemsize
                    + k * 4 * hidden * w_cat.dtype.itemsize
                    + batch * 2 * hidden * 4)                 # f32 hc out
    work_bytes = 4 * batch * 4 * hidden * 4                   # preact/act/concat
    bytes_per_lstm = 2 * stream_bytes + work_bytes

    nb = lstms_per_block or _pick_lstms_per_block(
        num_lstms, bytes_per_lstm, budget, min_grid_steps=num_tc)
    assert num_lstms % nb == 0, "lstms_per_block must divide num_lstms"

    vmem_limit = int(min(vmem_cap,
                         max(32 * 1024 * 1024,
                             nb * bytes_per_lstm + 8 * 1024 * 1024)))

    flops = 2 * num_lstms * batch * k * 4 * hidden
    transcendentals = 5 * num_lstms * batch * hidden
    bytes_accessed = num_lstms * stream_bytes

    return pl.pallas_call(
        _group_lstm_kernel,
        out_shape=jax.ShapeDtypeStruct((num_lstms, batch, 2 * hidden),
                                       jnp.float32),
        grid_spec=pltpu.PrefetchScalarGridSpec(
            num_scalar_prefetch=0,
            grid=(num_lstms // nb,),
            in_specs=[
                pl.BlockSpec((nb, batch, k), lambda g: (g, 0, 0)),
                pl.BlockSpec((nb, batch, hidden), lambda g: (g, 0, 0)),
                pl.BlockSpec((nb, k, 4 * hidden), lambda g: (g, 0, 0)),
            ],
            out_specs=pl.BlockSpec((nb, batch, 2 * hidden),
                                   lambda g: (g, 0, 0)),
        ),
        compiler_params=pltpu.CompilerParams(
            dimension_semantics=("parallel",),
            vmem_limit_bytes=vmem_limit,
        ),
        cost_estimate=pl.CostEstimate(
            flops=flops, transcendentals=transcendentals,
            bytes_accessed=bytes_accessed),
    )(xh_nm, c_nm, w_cat)


def _group_lstm_seq_pallas(xs_nm, h0_nm, c0_nm, w_cat, *, lstms_per_block=None):
    """xs_nm (T,N,B,inp), h0/c0 (N,B,H), w_cat (N,inp+H,4H) -> (T,N,B,2H) f32."""
    seq_len, num_lstms, batch, inp = xs_nm.shape
    hidden = h0_nm.shape[-1]
    k = inp + hidden

    num_tc, budget, vmem_cap = _tpu_generation()

    per_lstm = 2 * (batch * inp * xs_nm.dtype.itemsize          # x_t block
                    + batch * 2 * hidden * 4                    # hc_t block
                    + k * 4 * hidden * w_cat.dtype.itemsize     # weights
                    + batch * hidden * h0_nm.dtype.itemsize
                    + batch * hidden * c0_nm.dtype.itemsize)
    per_lstm += 2 * batch * hidden * 4                          # h/c scratch
    per_lstm += 4 * batch * 4 * hidden * 4                      # f32 temps

    nb = lstms_per_block or _pick_lstms_per_block(
        num_lstms, per_lstm, budget, min_grid_steps=num_tc)
    assert num_lstms % nb == 0, "lstms_per_block must divide num_lstms"

    vmem_limit = int(min(vmem_cap,
                         max(32 * 1024 * 1024,
                             nb * per_lstm + 8 * 1024 * 1024)))

    flops = 2 * seq_len * num_lstms * batch * k * 4 * hidden
    transcendentals = 5 * seq_len * num_lstms * batch * hidden
    bytes_accessed = (num_lstms * (k * 4 * hidden * w_cat.dtype.itemsize
                                   + batch * hidden
                                   * (h0_nm.dtype.itemsize
                                      + c0_nm.dtype.itemsize))
                      + seq_len * num_lstms
                      * (batch * inp * xs_nm.dtype.itemsize
                         + batch * 2 * hidden * 4))

    return pl.pallas_call(
        _group_lstm_seq_kernel,
        out_shape=jax.ShapeDtypeStruct(
            (seq_len, num_lstms, batch, 2 * hidden), jnp.float32),
        grid_spec=pltpu.PrefetchScalarGridSpec(
            num_scalar_prefetch=0,
            grid=(num_lstms // nb, seq_len),
            in_specs=[
                # x_t changes every timestep ...
                pl.BlockSpec((1, nb, batch, inp), lambda g, t: (t, g, 0, 0)),
                # ... while h0 / c0 / W are constant in t -> stay resident in
                # VMEM (weights are DMA'd from HBM once per LSTM block).
                pl.BlockSpec((nb, batch, hidden), lambda g, t: (g, 0, 0)),
                pl.BlockSpec((nb, batch, hidden), lambda g, t: (g, 0, 0)),
                pl.BlockSpec((nb, k, 4 * hidden), lambda g, t: (g, 0, 0)),
            ],
            out_specs=pl.BlockSpec((1, nb, batch, 2 * hidden),
                                   lambda g, t: (t, g, 0, 0)),
            scratch_shapes=[
                pltpu.VMEM((nb, batch, hidden), jnp.float32),   # h carry
                pltpu.VMEM((nb, batch, hidden), jnp.float32),   # c carry
            ],
        ),
        compiler_params=pltpu.CompilerParams(
            dimension_semantics=("parallel", "arbitrary"),
            vmem_limit_bytes=vmem_limit,
        ),
        cost_estimate=pl.CostEstimate(
            flops=flops, transcendentals=transcendentals,
            bytes_accessed=bytes_accessed),
    )(xs_nm, h0_nm, c0_nm, w_cat)


# --------------------------------------------------------------------------
# Public wrappers (PyTorch layout convention)
# --------------------------------------------------------------------------

def group_lstm_cell(x, h, c, w_i2h, w_h2h, *, weight_dtype=jnp.bfloat16,
                    lstms_per_block=None):
    """GroupLSTMCell forward.

    x: (batch, num_lstms, inp_size); h, c: (batch, num_lstms, hidden)
    w_i2h: (num_lstms, inp_size, 4*hidden); w_h2h: (num_lstms, hidden, 4*hidden)
    weight_dtype: streaming dtype for weights and [x|h] (default bf16; gate and
      cell-state math is always f32).  Pass jnp.float32 for full precision.
    Returns (h_t, c_t): h_t in h.dtype, c_t in float32 (kept wide so the
      recurrent cell state does not drift if the cell is iterated in time).
    """
    batch = x.shape[0]
    hidden = h.shape[-1]
    compute_dtype = jnp.dtype(weight_dtype) if weight_dtype is not None else x.dtype

    # One-time weight fusion [Wi; Wh] along K (hoist outside a time loop).
    w_cat = jnp.concatenate([w_i2h, w_h2h], axis=1).astype(compute_dtype)

    # LSTM-major relayout fused with building [x | h]; cast in the wrapper so
    # the kernel streams the narrow dtype straight into the MXU.
    xh_nm = jnp.transpose(jnp.concatenate([x, h], axis=-1),
                          (1, 0, 2)).astype(compute_dtype)
    c_nm = jnp.transpose(c, (1, 0, 2))

    # Pad batch to a multiple of 8 sublanes.
    batch_p = ((batch + 7) // 8) * 8
    xh_nm = _pad_axis(xh_nm, 1, batch_p)
    c_nm = _pad_axis(c_nm, 1, batch_p)

    hc_nm = _group_lstm_pallas(xh_nm, c_nm, w_cat,
                               lstms_per_block=lstms_per_block)

    hc = jnp.transpose(hc_nm[:, :batch], (1, 0, 2))           # (B, N, 2H) f32
    return hc[..., :hidden].astype(h.dtype), hc[..., hidden:]


def group_lstm_sequence(xs, h0, c0, w_i2h, w_h2h, *, weight_dtype=jnp.bfloat16,
                        lstms_per_block=None):
    """Run GroupLSTMCell over a whole sequence inside ONE pallas_call.

    xs: (seq_len, batch, num_lstms, inp_size); h0, c0: (batch, num_lstms, hidden)
    Returns (h_seq, c_seq): (seq_len, batch, num_lstms, hidden), h_seq in
    h0.dtype, c_seq in float32.
    """
    seq_len, batch, num_lstms, inp = xs.shape
    hidden = h0.shape[-1]
    compute_dtype = jnp.dtype(weight_dtype) if weight_dtype is not None else xs.dtype

    w_cat = jnp.concatenate([w_i2h, w_h2h], axis=1).astype(compute_dtype)

    xs_nm = jnp.transpose(xs, (0, 2, 1, 3)).astype(compute_dtype)  # (T,N,B,I)
    h0_nm = jnp.transpose(h0, (1, 0, 2))
    c0_nm = jnp.transpose(c0, (1, 0, 2))

    batch_p = ((batch + 7) // 8) * 8
    xs_nm = _pad_axis(xs_nm, 2, batch_p)
    h0_nm = _pad_axis(h0_nm, 1, batch_p)
    c0_nm = _pad_axis(c0_nm, 1, batch_p)

    hc_seq = _group_lstm_seq_pallas(xs_nm, h0_nm, c0_nm, w_cat,
                                    lstms_per_block=lstms_per_block)

    hc_seq = jnp.transpose(hc_seq[:, :, :batch], (0, 2, 1, 3))  # (T,B,N,2H)
    return hc_seq[..., :hidden].astype(h0.dtype), hc_seq[..., hidden:]


# --------------------------------------------------------------------------
# Pure-JAX references (mirror the PyTorch module exactly)
# --------------------------------------------------------------------------

def _reference(x, h, c, w_i2h, w_h2h):
    hidden = h.shape[-1]
    hp = jax.lax.Precision.HIGHEST
    preact = (jnp.einsum("bni,nio->bno", x, w_i2h, precision=hp)
              + jnp.einsum("bnh,nho->bno", h, w_h2h, precision=hp))
    gates = jax.nn.sigmoid(preact[:, :, :3 * hidden])
    g_t = jnp.tanh(preact[:, :, 3 * hidden:])
    i_t = gates[:, :, :hidden]
    f_t = gates[:, :, hidden:2 * hidden]
    o_t = gates[:, :, 2 * hidden:3 * hidden]
    c_t = c * f_t + i_t * g_t
    h_t = o_t * jnp.tanh(c_t)
    return h_t, c_t


def _reference_sequence(xs, h0, c0, w_i2h, w_h2h):
    def step(carry, x_t):
        h, c = carry
        h, c = _reference(x_t, h, c, w_i2h, w_h2h)
        return (h, c), (h, c)
    _, (hs, cs) = jax.lax.scan(step, (h0, c0), xs)
    return hs, cs


# --------------------------------------------------------------------------
# Self-test
# --------------------------------------------------------------------------

if __name__ == "__main__":
    batch = 4
    num_lstms = 4
    inp_size = 16
    hidden = 32          # -> 4*hidden = 128 (lane-aligned preact)
    seq_len = 8

    key = jax.random.PRNGKey(0)
    k_x, k_h, k_c, k_wi, k_wh, k_xs = jax.random.split(key, 6)

    x = jax.random.normal(k_x, (batch, num_lstms, inp_size), dtype=jnp.float32)
    h0 = jax.random.normal(k_h, (batch, num_lstms, hidden), dtype=jnp.float32)
    c0 = jax.random.normal(k_c, (batch, num_lstms, hidden), dtype=jnp.float32)

    # reset_parameters(): uniform(-stdv, stdv), stdv = 1/sqrt(hidden_size)
    stdv = 1.0 / math.sqrt(hidden)
    w_i2h = jax.random.uniform(
        k_wi, (num_lstms, inp_size, 4 * hidden), jnp.float32, -stdv, stdv)
    w_h2h = jax.random.uniform(
        k_wh, (num_lstms, hidden, 4 * hidden), jnp.float32, -stdv, stdv)

    h_ref, c_ref = _reference(x, h0, c0, w_i2h, w_h2h)

    # f32 streaming path.  Tolerance leaves headroom for the MXU's f32
    # pass-decomposition; genuine logic errors are O(0.1-1).
    h_t, c_t = group_lstm_cell(x, h0, c0, w_i2h, w_h2h,
                               weight_dtype=jnp.float32)
    jax.block_until_ready((h_t, c_t))
    assert h_t.shape == (batch, num_lstms, hidden)
    assert c_t.shape == (batch, num_lstms, hidden)
    assert jnp.allclose(h_t, h_ref, atol=2e-2, rtol=1e-2)
    assert jnp.allclose(c_t, c_ref, atol=2e-2, rtol=1e-2)

    # Default path: bf16 weight/activation streaming, f32 gate math.
    h_bf, c_bf = group_lstm_cell(x, h0, c0, w_i2h, w_h2h)
    jax.block_until_ready((h_bf, c_bf))
    assert jnp.allclose(h_bf, h_ref, atol=6e-2)
    assert jnp.allclose(c_bf, c_ref, atol=6e-2)

    # Sequence version: weights resident in VMEM across all timesteps.
    xs = jax.random.normal(k_xs, (seq_len, batch, num_lstms, inp_size),
                           dtype=jnp.float32)
    hs_ref, cs_ref = _reference_sequence(xs, h0, c0, w_i2h, w_h2h)
    hs, cs = group_lstm_sequence(xs, h0, c0, w_i2h, w_h2h,
                                 weight_dtype=jnp.float32)
    jax.block_until_ready((hs, cs))
    assert hs.shape == (seq_len, batch, num_lstms, hidden)
    assert cs.shape == (seq_len, batch, num_lstms, hidden)
    assert jnp.allclose(hs, hs_ref, atol=5e-2, rtol=1e-2)
    assert jnp.allclose(cs, cs_ref, atol=5e-2, rtol=1e-2)

    print("KERNEL_OK")
</pallas_src>

<mosaic_0001>
module attributes {stable_mosaic.version = 11 : i64} {
  func.func @_group_lstm_kernel(%arg0: i32, %arg1: memref<4x8x48xf32, #tpu.memory_space<vmem>>, %arg2: memref<4x8x32xf32, #tpu.memory_space<vmem>>, %arg3: memref<4x48x128xf32, #tpu.memory_space<vmem>>, %arg4: memref<4x8x64xf32, #tpu.memory_space<vmem>>) attributes {dimension_semantics = [#tpu.dimension_semantics<parallel>], iteration_bounds = array<i64: 1>, scalar_prefetch = 0 : i64, scratch_operands = 0 : i64, tpu.core_type = #tpu.core_type<tc>, window_params = [{transform_indices = @transform_0, window_bounds = array<i64: 4, 8, 48>}, {transform_indices = @transform_1, window_bounds = array<i64: 4, 8, 32>}, {transform_indices = @transform_2, window_bounds = array<i64: 4, 48, 128>}, {transform_indices = @transform_3, window_bounds = array<i64: 4, 8, 64>}]} {
    %c0 = arith.constant 0 : index
    %c0_0 = arith.constant 0 : index
    %c0_1 = arith.constant 0 : index
    %0 = vector.load %arg3[%c0, %c0_0, %c0_1] : memref<4x48x128xf32, #tpu.memory_space<vmem>>, vector<4x48x128xf32>
    %c0_2 = arith.constant 0 : index
    %c0_3 = arith.constant 0 : index
    %c0_4 = arith.constant 0 : index
    %1 = vector.load %arg1[%c0_2, %c0_3, %c0_4] : memref<4x8x48xf32, #tpu.memory_space<vmem>>, vector<4x8x48xf32>
    %c0_5 = arith.constant 0 : index
    %c0_6 = arith.constant 0 : index
    %c0_7 = arith.constant 0 : index
    %2 = vector.load %arg2[%c0_5, %c0_6, %c0_7] : memref<4x8x32xf32, #tpu.memory_space<vmem>>, vector<4x8x32xf32>
    "tpu.trace_start"() <{level = 10 : i32, message = "nbk,nko->nbo"}> : () -> ()
    %cst = arith.constant dense<0.000000e+00> : vector<4x8x128xf32>
    %3 = tpu.matmul %1, %0, %cst {dimension_numbers = #tpu.dot_dimension_numbers<[2], [1], [1], [2], [0, 0, 0, 1, 1, 2], [0], [0]>} : vector<4x8x48xf32>, vector<4x48x128xf32>, vector<4x8x128xf32> -> vector<4x8x128xf32>
    "tpu.trace_stop"() : () -> ()
    %4 = tpu.iota {dimensions = array<i32: 2>} : vector<4x8x128xi32>
    %c96_i32 = arith.constant 96 : i32
    %5 = vector.broadcast %c96_i32 : i32 to vector<4x8x128xi32>
    %6 = arith.cmpi slt, %4, %5 : vector<4x8x128xi32>
    %7 = arith.negf %3 : vector<4x8x128xf32>
    %8 = math.exp %7 : vector<4x8x128xf32>
    %cst_8 = arith.constant 1.000000e+00 : f32
    %9 = vector.broadcast %cst_8 : f32 to vector<4x8x128xf32>
    %10 = arith.addf %9, %8 : vector<4x8x128xf32>
    %11 = arith.divf %9, %10 : vector<4x8x128xf32>
    %12 = math.tanh %3 : vector<4x8x128xf32>
    %13 = arith.select %6, %11, %12 : vector<4x8x128xi1>, vector<4x8x128xf32>
    %14 = vector.extract_strided_slice %13 {offsets = [0, 0, 0], sizes = [4, 8, 32], strides = [1, 1, 1]} : vector<4x8x128xf32> to vector<4x8x32xf32>
    %15 = vector.extract_strided_slice %13 {offsets = [0, 0, 32], sizes = [4, 8, 32], strides = [1, 1, 1]} : vector<4x8x128xf32> to vector<4x8x32xf32>
    %16 = vector.extract_strided_slice %13 {offsets = [0, 0, 64], sizes = [4, 8, 32], strides = [1, 1, 1]} : vector<4x8x128xf32> to vector<4x8x32xf32>
    %17 = vector.extract_strided_slice %13 {offsets = [0, 0, 96], sizes = [4, 8, 32], strides = [1, 1, 1]} : vector<4x8x128xf32> to vector<4x8x32xf32>
    %18 = arith.mulf %2, %15 : vector<4x8x32xf32>
    %19 = arith.mulf %14, %17 : vector<4x8x32xf32>
    %20 = arith.addf %18, %19 : vector<4x8x32xf32>
    %21 = math.tanh %20 : vector<4x8x32xf32>
    %22 = arith.mulf %16, %21 : vector<4x8x32xf32>
    %23 = tpu.concatenate %22, %20 in 2 : vector<4x8x32xf32>, vector<4x8x32xf32> -> vector<4x8x64xf32>
    %c0_9 = arith.constant 0 : index
    %c0_10 = arith.constant 0 : index
    %c0_11 = arith.constant 0 : index
    %24 = vector.load %arg4[%c0_9, %c0_10, %c0_11] : memref<4x8x64xf32, #tpu.memory_space<vmem>>, vector<4x8x64xf32>
    tpu.vector_store %arg4[%c0_9, %c0_10, %c0_11], %23 {strides = array<i32>} : memref<4x8x64xf32, #tpu.memory_space<vmem>>, vector<4x8x64xf32>,
    return
  }
  func.func @transform_0(%arg0: i32) -> (i32, i32, i32) {
    %c0_i32 = arith.constant 0 : i32
    %c0_i32_0 = arith.constant 0 : i32
    %c0_i32_1 = arith.constant 0 : i32
    return %arg0, %c0_i32, %c0_i32_0 : i32, i32, i32
  }
  func.func @transform_1(%arg0: i32) -> (i32, i32, i32) {
    %c0_i32 = arith.constant 0 : i32
    %c0_i32_0 = arith.constant 0 : i32
    %c0_i32_1 = arith.constant 0 : i32
    return %arg0, %c0_i32, %c0_i32_0 : i32, i32, i32
  }
  func.func @transform_2(%arg0: i32) -> (i32, i32, i32) {
    %c0_i32 = arith.constant 0 : i32
    %c0_i32_0 = arith.constant 0 : i32
    %c0_i32_1 = arith.constant 0 : i32
    return %arg0, %c0_i32, %c0_i32_0 : i32, i32, i32
  }
  func.func @transform_3(%arg0: i32) -> (i32, i32, i32) {
    %c0_i32 = arith.constant 0 : i32
    %c0_i32_0 = arith.constant 0 : i32
    %c0_i32_1 = arith.constant 0 : i32
    return %arg0, %c0_i32, %c0_i32_0 : i32, i32, i32
  }
}

</mosaic_0001>

<llo_original>
// kernel: tpu_custom_call.1
$region0: #{tpu_custom_call.1}
  #allocation0 [shape = 'u32[]', space=smem, size = 0x4, offset = 0x4, fixed_abs, tag = 'smem constant byte address 0x4 - core index']
  #allocation1 [shape = 'u32[144,128]{1,0:T(1,128)}', space=vmem, size = 0x12000, scoped, tag = 'internal scratch']
  %s0 = inlined_call_operand.hbm [shape: f32[4,8,48], index: 0, kind: input, shape index: {}]
  %s1 = inlined_call_operand.hbm [shape: f32[4,8,32], index: 1, kind: input, shape index: {}]
  %s2 = inlined_call_operand.hbm [shape: f32[4,48,128], index: 2, kind: input, shape index: {}]
  %s3 = inlined_call_operand.hbm [shape: f32[4,8,64], index: 3, kind: output, shape index: {}]
  %s4 = sld [smem:[#allocation0]]
  $region34: #{tpu_custom_call.1} parent=0
    _
  %s6 = ssub.s32 1, %s4
  %s7 = scalar_select 0, %s6, %s4
  $region1: #{tpu_custom_call.1} parent=0
    #allocation2 [shape = 'u8[16384]{0}', space=vmem, size = 0x4000, scoped, tag = 'input window, operand 0, single buffered']
    #allocation3 [shape = 's32[1]{0}', space=sflag, size = 0x4, scoped, tag = 'scoped memory for tpu_custom_call.1']
    #allocation4 [shape = 's32[1]{0}', space=sflag, size = 0x4, scoped, tag = 'scoped memory for tpu_custom_call.1']
    #allocation5 [shape = 'u8[16384]{0}', space=vmem, size = 0x4000, scoped, tag = 'input window, operand 1, single buffered']
    #allocation6 [shape = 's32[1]{0}', space=sflag, size = 0x4, scoped, tag = 'scoped memory for tpu_custom_call.1']
    #allocation7 [shape = 'u8[98304]{0}', space=vmem, size = 0x18000, scoped, tag = 'input window, operand 2, single buffered']
    #allocation8 [shape = 'u8[16384]{0}', space=vmem, size = 0x4000, scoped, tag = 'output window, operand 0, single buffered']
    %8 = vsyncpa [#allocation3], 0
    %9 = vsyncpa [#allocation6], 0
    %10 = vsyncpa [#allocation4], 0
    // Predicated region
    $region2: #{tpu_custom_call.1} parent=1 // pred_check
      _
    $region3: #{tpu_custom_call.1} parent=1 // pred_check_branch
      %12 = sbr.rel (0) target = $region5
    $region4: #{tpu_custom_call.1} parent=1 // pred_region
      %s14 = ssub.s32 512, 512
      %15 = vsyncadd [#allocation3], %s14
      %s16 = sshll.u32 [#allocation2], 4
      %s17 = int_to_ptr.vmem [resolvable:$true] %s16
      %22 = dma.hbm_to_vmem [thread:$0]  %s0, 512, %s17, [#allocation3], 128, 128, 8
    $region5: #{tpu_custom_call.1} parent=1 // pred_fallthru
      _
    // Predicated region
    $region6: #{tpu_custom_call.1} parent=1 // pred_check
      _
    $region7: #{tpu_custom_call.1} parent=1 // pred_check_branch
      %24 = sbr.rel (0) target = $region9
    $region8: #{tpu_custom_call.1} parent=1 // pred_region
      %s26 = ssub.s32 512, 512
      %27 = vsyncadd [#allocation6], %s26
      %s28 = sshll.u32 [#allocation5], 4
      %s29 = int_to_ptr.vmem [resolvable:$true] %s28
      %34 = dma.hbm_to_vmem [thread:$0]  %s1, 512, %s29, [#allocation6], 128, 128, 8
    $region9: #{tpu_custom_call.1} parent=1 // pred_fallthru
      _
    // Predicated region
    $region10: #{tpu_custom_call.1} parent=1 // pred_check
      _
    $region11: #{tpu_custom_call.1} parent=1 // pred_check_branch
      %36 = sbr.rel (0) target = $region13
    $region12: #{tpu_custom_call.1} parent=1 // pred_region
      %s38 = ssub.s32 3072, 3072
      %39 = vsyncadd [#allocation6], %s38
      %s40 = sshll.u32 [#allocation7], 4
      %s41 = int_to_ptr.vmem [resolvable:$true] %s40
      %46 = dma.hbm_to_vmem [thread:$0]  %s2, 3072, %s41, [#allocation6], 128, 128, 8
    $region13: #{tpu_custom_call.1} parent=1 // pred_fallthru
      _
    // Predicated region
    $region14: #{tpu_custom_call.1} parent=1 // pred_check
      _
    $region15: #{tpu_custom_call.1} parent=1 // pred_check_branch
      %48 = sbr.rel (0) target = $region17
    $region16: #{tpu_custom_call.1} parent=1 // pred_region
      %49 = dma.done [#allocation3], 512
    $region17: #{tpu_custom_call.1} parent=1 // pred_fallthru
      _
    // Predicated region
    $region18: #{tpu_custom_call.1} parent=1 // pred_check
      _
    $region19: #{tpu_custom_call.1} parent=1 // pred_check_branch
      %51 = sbr.rel (0) target = $region21
    $region20: #{tpu_custom_call.1} parent=1 // pred_region
      %52 = dma.done [#allocation6], 512
    $region21: #{tpu_custom_call.1} parent=1 // pred_fallthru
      _
    // Predicated region
    $region22: #{tpu_custom_call.1} parent=1 // pred_check
      _
    $region23: #{tpu_custom_call.1} parent=1 // pred_check_branch
      %54 = sbr.rel (0) target = $region25
    $region24: #{tpu_custom_call.1} parent=1 // pred_region
      %55 = dma.done [#allocation6], 3072
    $region25: #{tpu_custom_call.1} parent=1 // pred_fallthru
      _
    %v56 = vld [vmem:[#allocation7] sm:$0xff]
    %v57 = vld [vmem:[#allocation7 + $0x8] sm:$0xff]
    %v58 = vld [vmem:[#allocation7 + $0x10] sm:$0xff]
    %v59 = vld [vmem:[#allocation7 + $0x18] sm:$0xff]
    %v60 = vld [vmem:[#allocation7 + $0x20] sm:$0xff]
    %v61 = vld [vmem:[#allocation7 + $0x28] sm:$0xff]
    %v62 = vld [vmem:[#allocation7 + $0x30] sm:$0xff]
    %v63 = vld [vmem:[#allocation7 + $0x38] sm:$0xff]
    %v64 = vld [vmem:[#allocation7 + $0x40] sm:$0xff]
    %v65 = vld [vmem:[#allocation7 + $0x48] sm:$0xff]
    %v66 = vld [vmem:[#allocation7 + $0x50] sm:$0xff]
    %v67 = vld [vmem:[#allocation7 + $0x58] sm:$0xff]
    %v68 = vld [vmem:[#allocation7 + $0x60] sm:$0xff]
    %v69 = vld [vmem:[#allocation7 + $0x68] sm:$0xff]
    %v70 = vld [vmem:[#allocation7 + $0x70] sm:$0xff]
    %v71 = vld [vmem:[#allocation7 + $0x78] sm:$0xff]
    %v72 = vld [vmem:[#allocation7 + $0x80] sm:$0xff]
    %v73 = vld [vmem:[#allocation7 + $0x88] sm:$0xff]
    %v74 = vld [vmem:[#allocation7 + $0x90] sm:$0xff]
    %v75 = vld [vmem:[#allocation7 + $0x98] sm:$0xff]
    %v76 = vld [vmem:[#allocation7 + $0xa0] sm:$0xff]
    %v77 = vld [vmem:[#allocation7 + $0xa8] sm:$0xff]
    %v78 = vld [vmem:[#allocation7 + $0xb0] sm:$0xff]
    %v79 = vld [vmem:[#allocation7 + $0xb8] sm:$0xff]
    %v80 = vld [vmem:[#allocation2] sm:$0xff]
    %v81 = vld [vmem:[#allocation2 + $0x8] sm:$0xff]
    %v82 = vld [vmem:[#allocation2 + $0x10] sm:$0xff]
    %v83 = vld [vmem:[#allocation2 + $0x18] sm:$0xff]
    %v84 = vld [vmem:[#allocation5] sm:$0xff]
    %v85 = vld [vmem:[#allocation5 + $0x8] sm:$0xff]
    %v86 = vld [vmem:[#allocation5 + $0x10] sm:$0xff]
    %v87 = vld [vmem:[#allocation5 + $0x18] sm:$0xff]
    %vm88 = vcmask 392192
    %v90 = vsel %vm88, %v80, 0
    %92 = vmatprep.subr.mxu0 0.0
    %93 = vmatpush1.msra.mxu0 0.0
    %94 = vmatprep.subr.mxu0 0.0
    %95 = vmatpush1.msra.mxu0 0.0
    %96 = vmatprep.subr.mxu0 0.0
    %97 = vmatpush1.msra.mxu0 0.0
    %98 = vmatprep.subr.mxu0 0.0
    %99 = vmatpush1.msra.mxu0 0.0
    %100 = vmatprep.subr.mxu0 0.0
    %101 = vmatpush1.msra.mxu0 0.0
    %102 = vmatprep.subr.mxu0 0.0
    %103 = vmatpush1.msra.mxu0 0.0
    %104 = vmatprep.subr.mxu0 0.0
    %105 = vmatpush1.msra.mxu0 0.0
    %106 = vmatprep.subr.mxu0 0.0
    %107 = vmatpush1.msra.mxu0 0.0
    %108 = vmatprep.subr.mxu0 0.0
    %109 = vmatpush1.msra.mxu0 0.0
    %110 = vmatprep.subr.mxu0 0.0
    %111 = vmatpush1.msra.mxu0 0.0
    %112 = vmatprep.subr.mxu0 0.0
    %113 = vmatpush1.msra.mxu0 %v61
    %114 = vmatprep.subr.mxu0 0.0
    %115 = vmatpush1.msra.mxu0 %v60
    %116 = vmatprep.subr.mxu0 0.0
    %117 = vmatpush1.msra.mxu0 %v59
    %118 = vmatprep.subr.mxu0 0.0
    %119 = vmatpush1.msra.mxu0 %v58
    %120 = vmatprep.subr.mxu0 0.0
    %121 = vmatpush1.msra.mxu0 %v57
    %122 = vmatprep.subr.mxu0 0.0
    %123 = vmatpush1.msra.mxu0 %v56
    %124 = vmatprep.subr.mxu0 0.0
    %125 = vmatpush2.msra.mxu0 0.0
    %126 = vmatprep.subr.mxu0 0.0
    %127 = vmatpush2.msra.mxu0 0.0
    %128 = vmatprep.subr.mxu0 0.0
    %129 = vmatpush2.msra.mxu0 0.0
    %130 = vmatprep.subr.mxu0 0.0
    %131 = vmatpush2.msra.mxu0 0.0
    %132 = vmatprep.subr.mxu0 0.0
    %133 = vmatpush2.msra.mxu0 0.0
    %134 = vmatprep.subr.mxu0 0.0
    %135 = vmatpush2.msra.mxu0 0.0
    %136 = vmatprep.subr.mxu0 0.0
    %137 = vmatpush2.msra.mxu0 0.0
    %138 = vmatprep.subr.mxu0 0.0
    %139 = vmatpush2.msra.mxu0 0.0
    %140 = vmatprep.subr.mxu0 0.0
    %141 = vmatpush2.msra.mxu0 0.0
    %142 = vmatprep.subr.mxu0 0.0
    %143 = vmatpush2.msra.mxu0 0.0
    %144 = vmatprep.subr.mxu0 0.0
    %145 = vmatpush2.msra.mxu0 0.0
    %146 = vmatprep.subr.mxu0 0.0
    %147 = vmatpush2.msra.mxu0 0.0
    %148 = vmatprep.subr.mxu0 0.0
    %149 = vmatpush2.msra.mxu0 0.0
    %150 = vmatprep.subr.mxu0 0.0
    %151 = vmatpush2.msra.mxu0 0.0
    %152 = vmatprep.subr.mxu0 0.0
    %153 = vmatpush2.msra.mxu0 0.0
    %154 = vmatprep.subr.mxu0 0.0
    %155 = vmatpush2.msra.mxu0 0.0
    %156 = vmatprep.mubr.f32.mxu0 0.0
    %157 = vmatmul.mubr.f32.gmra.mxu0 %v90
    %v158 = vpop.f32.mrf.mxu0
    %v159 = vadd.f32 0.0, %v158
    %v160 = vpop.f32.mrf.mxu0
    %161 = vdwg.mxu0
    %v163 = vsel %vm88, %v81, 0
    %165 = vmatprep.subr.mxu0 0.0
    %166 = vmatpush1.msra.mxu0 0.0
    %167 = vmatprep.subr.mxu0 0.0
    %168 = vmatpush1.msra.mxu0 0.0
    %169 = vmatprep.subr.mxu0 0.0
    %170 = vmatpush1.msra.mxu0 0.0
    %171 = vmatprep.subr.mxu0 0.0
    %172 = vmatpush1.msra.mxu0 0.0
    %173 = vmatprep.subr.mxu0 0.0
    %174 = vmatpush1.msra.mxu0 0.0
    %175 = vmatprep.subr.mxu0 0.0
    %176 = vmatpush1.msra.mxu0 0.0
    %177 = vmatprep.subr.mxu0 0.0
    %178 = vmatpush1.msra.mxu0 0.0
    %179 = vmatprep.subr.mxu0 0.0
    %180 = vmatpush1.msra.mxu0 0.0
    %181 = vmatprep.subr.mxu0 0.0
    %182 = vmatpush1.msra.mxu0 0.0
    %183 = vmatprep.subr.mxu0 0.0
    %184 = vmatpush1.msra.mxu0 0.0
    %185 = vmatprep.subr.mxu0 0.0
    %186 = vmatpush1.msra.mxu0 %v67
    %187 = vmatprep.subr.mxu0 0.0
    %188 = vmatpush1.msra.mxu0 %v66
    %189 = vmatprep.subr.mxu0 0.0
    %190 = vmatpush1.msra.mxu0 %v65
    %191 = vmatprep.subr.mxu0 0.0
    %192 = vmatpush1.msra.mxu0 %v64
    %193 = vmatprep.subr.mxu0 0.0
    %194 = vmatpush1.msra.mxu0 %v63
    %195 = vmatprep.subr.mxu0 0.0
    %196 = vmatpush1.msra.mxu0 %v62
    %197 = vmatprep.subr.mxu0 0.0
    %198 = vmatpush2.msra.mxu0 0.0
    %199 = vmatprep.subr.mxu0 0.0
    %200 = vmatpush2.msra.mxu0 0.0
    %201 = vmatprep.subr.mxu0 0.0
    %202 = vmatpush2.msra.mxu0 0.0
    %203 = vmatprep.subr.mxu0 0.0
    %204 = vmatpush2.msra.mxu0 0.0
    %205 = vmatprep.subr.mxu0 0.0
    %206 = vmatpush2.msra.mxu0 0.0
    %207 = vmatprep.subr.mxu0 0.0
    %208 = vmatpush2.msra.mxu0 0.0
    %209 = vmatprep.subr.mxu0 0.0
    %210 = vmatpush2.msra.mxu0 0.0
    %211 = vmatprep.subr.mxu0 0.0
    %212 = vmatpush2.msra.mxu0 0.0
    %213 = vmatprep.subr.mxu0 0.0
    %214 = vmatpush2.msra.mxu0 0.0
    %215 = vmatprep.subr.mxu0 0.0
    %216 = vmatpush2.msra.mxu0 0.0
    %217 = vmatprep.subr.mxu0 0.0
    %218 = vmatpush2.msra.mxu0 0.0
    %219 = vmatprep.subr.mxu0 0.0
    %220 = vmatpush2.msra.mxu0 0.0
    %221 = vmatprep.subr.mxu0 0.0
    %222 = vmatpush2.msra.mxu0 0.0
    %223 = vmatprep.subr.mxu0 0.0
    %224 = vmatpush2.msra.mxu0 0.0
    %225 = vmatprep.subr.mxu0 0.0
    %226 = vmatpush2.msra.mxu0 0.0
    %227 = vmatprep.subr.mxu0 0.0
    %228 = vmatpush2.msra.mxu0 0.0
    %229 = vmatprep.mubr.f32.mxu0 0.0
    %230 = vmatmul.mubr.f32.gmra.mxu0 %v163
    %v231 = vpop.f32.mrf.mxu0
    %v232 = vadd.f32 0.0, %v231
    %v233 = vpop.f32.mrf.mxu0
    %234 = vdwg.mxu0
    %v236 = vsel %vm88, %v82, 0
    %238 = vmatprep.subr.mxu0 0.0
    %239 = vmatpush1.msra.mxu0 0.0
    %240 = vmatprep.subr.mxu0 0.0
    %241 = vmatpush1.msra.mxu0 0.0
    %242 = vmatprep.subr.mxu0 0.0
    %243 = vmatpush1.msra.mxu0 0.0
    %244 = vmatprep.subr.mxu0 0.0
    %245 = vmatpush1.msra.mxu0 0.0
    %246 = vmatprep.subr.mxu0 0.0
    %247 = vmatpush1.msra.mxu0 0.0
    %248 = vmatprep.subr.mxu0 0.0
    %249 = vmatpush1.msra.mxu0 0.0
    %250 = vmatprep.subr.mxu0 0.0
    %251 = vmatpush1.msra.mxu0 0.0
    %252 = vmatprep.subr.mxu0 0.0
    %253 = vmatpush1.msra.mxu0 0.0
    %254 = vmatprep.subr.mxu0 0.0
    %255 = vmatpush1.msra.mxu0 0.0
    %256 = vmatprep.subr.mxu0 0.0
    %257 = vmatpush1.msra.mxu0 0.0
    %258 = vmatprep.subr.mxu0 0.0
    %259 = vmatpush1.msra.mxu0 %v73
    %260 = vmatprep.subr.mxu0 0.0
    %261 = vmatpush1.msra.mxu0 %v72
    %262 = vmatprep.subr.mxu0 0.0
    %263 = vmatpush1.msra.mxu0 %v71
    %264 = vmatprep.subr.mxu0 0.0
    %265 = vmatpush1.msra.mxu0 %v70
    %266 = vmatprep.subr.mxu0 0.0
    %267 = vmatpush1.msra.mxu0 %v69
    %268 = vmatprep.subr.mxu0 0.0
    %269 = vmatpush1.msra.mxu0 %v68
    %270 = vmatprep.subr.mxu0 0.0
    %271 = vmatpush2.msra.mxu0 0.0
    %272 = vmatprep.subr.mxu0 0.0
    %273 = vmatpush2.msra.mxu0 0.0
    %274 = vmatprep.subr.mxu0 0.0
    %275 = vmatpush2.msra.mxu0 0.0
    %276 = vmatprep.subr.mxu0 0.0
    %277 = vmatpush2.msra.mxu0 0.0
    %278 = vmatprep.subr.mxu0 0.0
    %279 = vmatpush2.msra.mxu0 0.0
    %280 = vmatprep.subr.mxu0 0.0
    %281 = vmatpush2.msra.mxu0 0.0
    %282 = vmatprep.subr.mxu0 0.0
    %283 = vmatpush2.msra.mxu0 0.0
    %284 = vmatprep.subr.mxu0 0.0
    %285 = vmatpush2.msra.mxu0 0.0
    %286 = vmatprep.subr.mxu0 0.0
    %287 = vmatpush2.msra.mxu0 0.0
    %288 = vmatprep.subr.mxu0 0.0
    %289 = vmatpush2.msra.mxu0 0.0
    %290 = vmatprep.subr.mxu0 0.0
    %291 = vmatpush2.msra.mxu0 0.0
    %292 = vmatprep.subr.mxu0 0.0
    %293 = vmatpush2.msra.mxu0 0.0
    %294 = vmatprep.subr.mxu0 0.0
    %295 = vmatpush2.msra.mxu0 0.0
    %296 = vmatprep.subr.mxu0 0.0
    %297 = vmatpush2.msra.mxu0 0.0
    %298 = vmatprep.subr.mxu0 0.0
    %299 = vmatpush2.msra.mxu0 0.0
    %300 = vmatprep.subr.mxu0 0.0
    %301 = vmatpush2.msra.mxu0 0.0
    %302 = vmatprep.mubr.f32.mxu0 0.0
    %303 = vmatmul.mubr.f32.gmra.mxu0 %v236
    %v304 = vpop.f32.mrf.mxu0
    %v305 = vadd.f32 0.0, %v304
    %v306 = vpop.f32.mrf.mxu0
    %307 = vdwg.mxu0
    %v309 = vsel %vm88, %v83, 0
    %311 = vmatprep.subr.mxu0 0.0
    %312 = vmatpush1.msra.mxu0 0.0
    %313 = vmatprep.subr.mxu0 0.0
    %314 = vmatpush1.msra.mxu0 0.0
    %315 = vmatprep.subr.mxu0 0.0
    %316 = vmatpush1.msra.mxu0 0.0
    %317 = vmatprep.subr.mxu0 0.0
    %318 = vmatpush1.msra.mxu0 0.0
    %319 = vmatprep.subr.mxu0 0.0
    %320 = vmatpush1.msra.mxu0 0.0
    %321 = vmatprep.subr.mxu0 0.0
    %322 = vmatpush1.msra.mxu0 0.0
    %323 = vmatprep.subr.mxu0 0.0
    %324 = vmatpush1.msra.mxu0 0.0
    %325 = vmatprep.subr.mxu0 0.0
    %326 = vmatpush1.msra.mxu0 0.0
    %327 = vmatprep.subr.mxu0 0.0
    %328 = vmatpush1.msra.mxu0 0.0
    %329 = vmatprep.subr.mxu0 0.0
    %330 = vmatpush1.msra.mxu0 0.0
    %331 = vmatprep.subr.mxu0 0.0
    %332 = vmatpush1.msra.mxu0 %v79
    %333 = vmatprep.subr.mxu0 0.0
    %334 = vmatpush1.msra.mxu0 %v78
    %335 = vmatprep.subr.mxu0 0.0
    %336 = vmatpush1.msra.mxu0 %v77
    %337 = vmatprep.subr.mxu0 0.0
    %338 = vmatpush1.msra.mxu0 %v76
    %339 = vmatprep.subr.mxu0 0.0
    %340 = vmatpush1.msra.mxu0 %v75
    %341 = vmatprep.subr.mxu0 0.0
    %342 = vmatpush1.msra.mxu0 %v74
    %343 = vmatprep.subr.mxu0 0.0
    %344 = vmatpush2.msra.mxu0 0.0
    %345 = vmatprep.subr.mxu0 0.0
    %346 = vmatpush2.msra.mxu0 0.0
    %347 = vmatprep.subr.mxu0 0.0
    %348 = vmatpush2.msra.mxu0 0.0
    %349 = vmatprep.subr.mxu0 0.0
    %350 = vmatpush2.msra.mxu0 0.0
    %351 = vmatprep.subr.mxu0 0.0
    %352 = vmatpush2.msra.mxu0 0.0
    %353 = vmatprep.subr.mxu0 0.0
    %354 = vmatpush2.msra.mxu0 0.0
    %355 = vmatprep.subr.mxu0 0.0
    %356 = vmatpush2.msra.mxu0 0.0
    %357 = vmatprep.subr.mxu0 0.0
    %358 = vmatpush2.msra.mxu0 0.0
    %359 = vmatprep.subr.mxu0 0.0
    %360 = vmatpush2.msra.mxu0 0.0
    %361 = vmatprep.subr.mxu0 0.0
    %362 = vmatpush2.msra.mxu0 0.0
    %363 = vmatprep.subr.mxu0 0.0
    %364 = vmatpush2.msra.mxu0 0.0
    %365 = vmatprep.subr.mxu0 0.0
    %366 = vmatpush2.msra.mxu0 0.0
    %367 = vmatprep.subr.mxu0 0.0
    %368 = vmatpush2.msra.mxu0 0.0
    %369 = vmatprep.subr.mxu0 0.0
    %370 = vmatpush2.msra.mxu0 0.0
    %371 = vmatprep.subr.mxu0 0.0
    %372 = vmatpush2.msra.mxu0 0.0
    %373 = vmatprep.subr.mxu0 0.0
    %374 = vmatpush2.msra.mxu0 0.0
    %375 = vmatprep.mubr.f32.mxu0 0.0
    %376 = vmatmul.mubr.f32.gmra.mxu0 %v309
    %v377 = vpop.f32.mrf.mxu0
    %v378 = vadd.f32 0.0, %v377
    %v379 = vpop.f32.mrf.mxu0
    %380 = vdwg.mxu0
    %v381 = vlaneseq
    %v382 = vand.u32 %v381, 127
    %vm383 = vcmp.lt.s32.totalorder %v382, 96
    %v384 = vxor.u32 %v159, 2147483648
    %v385 = vxor.u32 %v232, 2147483648
    %v386 = vxor.u32 %v305, 2147483648
    %v387 = vxor.u32 %v378, 2147483648
    %v388 = vmul.f32 %v384, 1.442695
    %v389 = vpow.pop %v388
    %v390 = vmul.f32 %v385, 1.442695
    %v391 = vpow.pop %v390
    %v392 = vmul.f32 %v386, 1.442695
    %v393 = vpow.pop %v392
    %v394 = vmul.f32 %v387, 1.442695
    %v395 = vpow.pop %v394
    %v396 = vadd.f32 %v389, 1.0
    %v397 = vadd.f32 %v391, 1.0
    %v398 = vadd.f32 %v393, 1.0
    %v399 = vadd.f32 %v395, 1.0
    %v400 = vrcp.pop %v396
    %v401 = vmul.f32 1.0, %v400
    %v402 = vrcp.pop %v397
    %v403 = vmul.f32 1.0, %v402
    %v404 = vrcp.pop %v398
    %v405 = vmul.f32 1.0, %v404
    %v406 = vrcp.pop %v399
    %v407 = vmul.f32 1.0, %v406
    %v408 = vtanh.pop %v159
    %v409 = vtanh.pop %v232
    %v410 = vtanh.pop %v305
    %v411 = vtanh.pop %v378
    %v412 = vsel %vm383, %v401, %v408
    %v413 = vsel %vm383, %v403, %v409
    %v414 = vsel %vm383, %v405, %v410
    %v415 = vsel %vm383, %v407, %v411
    %420 = vrot.lane.b32.xlu0 %v412, 96
    %v421 = vpop.permute.xlu0 %420
    %422 = vrot.lane.b32.xlu0 %v413, 96
    %v423 = vpop.permute.xlu0 %422
    %424 = vrot.lane.b32.xlu0 %v414, 96
    %v425 = vpop.permute.xlu0 %424
    %426 = vrot.lane.b32.xlu0 %v415, 96
    %v427 = vpop.permute.xlu0 %426
    %v432 = vmul.f32 %v84, %v421
    %v433 = vmul.f32 %v85, %v423
    %v434 = vmul.f32 %v86, %v425
    %v435 = vmul.f32 %v87, %v427
    %436 = vrot.lane.b32.xlu0 %v412, 32
    %v437 = vpop.permute.xlu0 %436
    %438 = vrot.lane.b32.xlu0 %v413, 32
    %v439 = vpop.permute.xlu0 %438
    %440 = vrot.lane.b32.xlu0 %v414, 32
    %v441 = vpop.permute.xlu0 %440
    %442 = vrot.lane.b32.xlu0 %v415, 32
    %v443 = vpop.permute.xlu0 %442
    %v448 = vmul.f32 %v412, %v437
    %v449 = vmul.f32 %v413, %v439
    %v450 = vmul.f32 %v414, %v441
    %v451 = vmul.f32 %v415, %v443
    %v452 = vadd.f32 %v432, %v448
    %v453 = vadd.f32 %v433, %v449
    %v454 = vadd.f32 %v434, %v450
    %v455 = vadd.f32 %v435, %v451
    %v456 = vtanh.pop %v452
    %v457 = vtanh.pop %v453
    %v458 = vtanh.pop %v454
    %v459 = vtanh.pop %v455
    %464 = vrot.lane.b32.xlu0 %v456, 64
    %v465 = vpop.permute.xlu0 %464
    %466 = vrot.lane.b32.xlu0 %v457, 64
    %v467 = vpop.permute.xlu0 %466
    %468 = vrot.lane.b32.xlu0 %v458, 64
    %v469 = vpop.permute.xlu0 %468
    %470 = vrot.lane.b32.xlu0 %v459, 64
    %v471 = vpop.permute.xlu0 %470
    %v476 = vmul.f32 %v412, %v465
    %v477 = vmul.f32 %v413, %v467
    %v478 = vmul.f32 %v414, %v469
    %v479 = vmul.f32 %v415, %v471
    %484 = vrot.lane.b32.xlu0 %v476, 64
    %v485 = vpop.permute.xlu0 %484
    %486 = vrot.lane.b32.xlu0 %v477, 64
    %v487 = vpop.permute.xlu0 %486
    %488 = vrot.lane.b32.xlu0 %v478, 64
    %v489 = vpop.permute.xlu0 %488
    %490 = vrot.lane.b32.xlu0 %v479, 64
    %v491 = vpop.permute.xlu0 %490
    %500 = vrot.lane.b32.xlu0 %v452, 32
    %v501 = vpop.permute.xlu0 %500
    %502 = vrot.lane.b32.xlu0 %v453, 32
    %v503 = vpop.permute.xlu0 %502
    %504 = vrot.lane.b32.xlu0 %v454, 32
    %v505 = vpop.permute.xlu0 %504
    %506 = vrot.lane.b32.xlu0 %v455, 32
    %v507 = vpop.permute.xlu0 %506
    %vm512 = vcmask 261120
    %v513 = vsel %vm512, %v485, %v501
    %v514 = vsel %vm512, %v487, %v503
    %v515 = vsel %vm512, %v489, %v505
    %v516 = vsel %vm512, %v491, %v507
    %vm517 = vcmask 523264
    %518 = vst.msk [vmem:[#allocation8] sm:$0xff] %vm517, %v513
    %519 = vst.msk [vmem:[#allocation8 + $0x8] sm:$0xff] %vm517, %v514
    %520 = vst.msk [vmem:[#allocation8 + $0x10] sm:$0xff] %vm517, %v515
    %521 = vst.msk [vmem:[#allocation8 + $0x18] sm:$0xff] %vm517, %v516
    // Predicated region
    $region26: #{tpu_custom_call.1} parent=1 // pred_check
      _
    $region27: #{tpu_custom_call.1} parent=1 // pred_check_branch
      %523 = sbr.rel (0) target = $region29
    $region28: #{tpu_custom_call.1} parent=1 // pred_region
      %s525 = ssub.s32 512, 512
      %526 = vsyncadd [#allocation4], %s525
      %s527 = sshll.u32 [#allocation8], 4
      %s528 = int_to_ptr.vmem [resolvable:$true] %s527
      %533 = dma.vmem_to_hbm [thread:$0]  %s528, 512, %s3, [#allocation4], 128, 128, 8
    $region29: #{tpu_custom_call.1} parent=1 // pred_fallthru
      _
    // Predicated region
    $region30: #{tpu_custom_call.1} parent=1 // pred_check
      _
    $region31: #{tpu_custom_call.1} parent=1 // pred_check_branch
      %535 = sbr.rel (0) target = $region33
    $region32: #{tpu_custom_call.1} parent=1 // pred_region
      %536 = dma.done [#allocation4], 512
    $region33: #{tpu_custom_call.1} parent=1 // pred_fallthru
      _
    %537 = vsyncpa [#allocation3], 1
    %538 = vsyncpa [#allocation6], 1
    %539 = vsyncpa [#allocation4], 1

</llo_original>
